<compile_context>
chip_gen: v7x
topology: tpu7x:2x2x1
jax: 0.10.0
libtpu: 0.0.40
codegen_flags: <defaults>
</compile_context>

<pallas_src>
import functools

import jax
import jax.numpy as jnp
from jax.experimental import pallas as pl
from jax.experimental.pallas import tpu as pltpu

_EPS = 1e-5       # torch layer_norm default
_LANE = 128
_SUBLANE = 8


def _round_up(x: int, m: int) -> int:
    return (x + m - 1) // m * m


# ---------------------------------------------------------------------------
# Fused kernel: channel-downmix + running vector partials + in-place normalize
# (output is a full-array VMEM-resident block across the grid axis).
# ---------------------------------------------------------------------------
def _fused_kernel(x_ref, out_ref, s_acc, ss_acc, *, n_valid, inv_c):
    i = pl.program_id(0)

    @pl.when(i == 0)
    def _():
        s_acc[...] = jnp.zeros_like(s_acc)
        ss_acc[...] = jnp.zeros_like(ss_acc)

    x = x_ref[...].astype(jnp.float32)          # (C, R, 128)
    mono = jnp.sum(x, axis=0) * inv_c           # (R, 128) == mean over channels
    r_tile = mono.shape[0]

    row0 = pl.multiple_of(i * r_tile, r_tile)
    out_ref[pl.ds(row0, r_tile), :] = mono      # stage mono in resident output

    # Vector partial accumulators (VPU adds only; reduced once at the end).
    s_acc[...] = s_acc[...] + mono
    ss_acc[...] = ss_acc[...] + mono * mono

    @pl.when(i == pl.num_programs(0) - 1)
    def _():
        n = jnp.float32(n_valid)                # true (unpadded) sample count
        s = jnp.sum(s_acc[...])
        ss = jnp.sum(ss_acc[...])
        mean = s / n
        var = ss / n - mean * mean              # biased variance (layer_norm)
        inv = jax.lax.rsqrt(var + _EPS)
        out_ref[...] = (out_ref[...] - mean) * inv


# ---------------------------------------------------------------------------
# Streaming fallback (very long waveforms): pass 1 = mono + vector partials,
# pass 2 = elementwise normalize with precomputed (mean, inv).
# ---------------------------------------------------------------------------
def _pass1_kernel(x_ref, mono_ref, s_acc, ss_acc, *, inv_c):
    i = pl.program_id(0)

    @pl.when(i == 0)
    def _():
        s_acc[...] = jnp.zeros_like(s_acc)
        ss_acc[...] = jnp.zeros_like(ss_acc)

    x = x_ref[...].astype(jnp.float32)          # (C, R, 128)
    mono = jnp.sum(x, axis=0) * inv_c           # (R, 128)
    mono_ref[...] = mono
    s_acc[...] = s_acc[...] + mono
    ss_acc[...] = ss_acc[...] + mono * mono


def _pass2_kernel(stats_ref, mono_ref, out_ref):
    mean = stats_ref[0, 0]
    inv = stats_ref[0, 1]
    out_ref[...] = (mono_ref[...] - mean) * inv


# ---------------------------------------------------------------------------
# Wrapper
# ---------------------------------------------------------------------------
def audio_pipeline(waveform: jax.Array,
                   *,
                   rows_per_tile: int = 512,
                   fused_vmem_budget: int = 16 << 20) -> jax.Array:
    """waveform: float32 [C, T]  ->  normalized mono audio [T, 1]."""
    C, T = waveform.shape
    assert T >= 1

    rows = pl.cdiv(T, _LANE)
    R = min(rows_per_tile, _round_up(rows, _SUBLANE))
    R = _round_up(R, _SUBLANE)                  # block rows: multiple of 8
    rows_pad = _round_up(rows, R)
    T_pad = rows_pad * _LANE
    grid = (rows_pad // R,)
    inv_c = 1.0 / float(C)

    x = waveform.astype(jnp.float32)
    if T_pad != T:
        # Zero padding is exact: padded samples add 0 to sum and sum-of-squares
        # and the normalize step divides by the true T.
        x = jnp.pad(x, ((0, 0), (0, T_pad - T)))
    x3 = x.reshape(C, rows_pad, _LANE)          # sublane/lane-dense layout

    f32 = 4
    fused_bytes = (rows_pad * _LANE * f32              # resident output
                   + 2 * C * R * _LANE * f32           # double-buffered input
                   + 2 * R * _LANE * f32)              # s/ss accumulators

    if fused_bytes <= fused_vmem_budget:
        # -------- fused single-pass path (one HBM read of x, one write of out)
        out = pl.pallas_call(
            functools.partial(_fused_kernel, n_valid=T, inv_c=inv_c),
            out_shape=jax.ShapeDtypeStruct((rows_pad, _LANE), jnp.float32),
            grid_spec=pltpu.PrefetchScalarGridSpec(
                num_scalar_prefetch=0,
                grid=grid,
                in_specs=[pl.BlockSpec((C, R, _LANE), lambda i: (0, i, 0))],
                out_specs=pl.BlockSpec((rows_pad, _LANE), lambda i: (0, 0)),
                scratch_shapes=[pltpu.VMEM((R, _LANE), jnp.float32),
                                pltpu.VMEM((R, _LANE), jnp.float32)],
            ),
            compiler_params=pltpu.CompilerParams(
                dimension_semantics=("arbitrary",),   # resident out + accumulators
                vmem_limit_bytes=int(min(fused_bytes * 2 + (8 << 20), 48 << 20)),
            ),
        )(x3)
    else:
        # -------- streaming two-pass path for very long waveforms
        mono, s_part, ss_part = pl.pallas_call(
            functools.partial(_pass1_kernel, inv_c=inv_c),
            out_shape=(
                jax.ShapeDtypeStruct((rows_pad, _LANE), jnp.float32),
                jax.ShapeDtypeStruct((R, _LANE), jnp.float32),
                jax.ShapeDtypeStruct((R, _LANE), jnp.float32),
            ),
            grid_spec=pltpu.PrefetchScalarGridSpec(
                num_scalar_prefetch=0,
                grid=grid,
                in_specs=[pl.BlockSpec((C, R, _LANE), lambda i: (0, i, 0))],
                out_specs=[
                    pl.BlockSpec((R, _LANE), lambda i: (i, 0)),
                    pl.BlockSpec((R, _LANE), lambda i: (0, 0)),  # resident acc
                    pl.BlockSpec((R, _LANE), lambda i: (0, 0)),  # resident acc
                ],
            ),
            compiler_params=pltpu.CompilerParams(
                dimension_semantics=("arbitrary",)),
        )(x3)

        n = jnp.float32(T)
        mean = jnp.sum(s_part) / n
        var = jnp.sum(ss_part) / n - mean * mean
        inv = jax.lax.rsqrt(var + _EPS)
        stats = jnp.stack([mean, inv]).reshape(1, 2).astype(jnp.float32)

        out = pl.pallas_call(
            _pass2_kernel,
            out_shape=jax.ShapeDtypeStruct((rows_pad, _LANE), jnp.float32),
            grid_spec=pltpu.PrefetchScalarGridSpec(
                num_scalar_prefetch=0,
                grid=grid,
                in_specs=[
                    pl.BlockSpec((1, 2), lambda i: (0, 0)),
                    pl.BlockSpec((R, _LANE), lambda i: (i, 0)),
                ],
                out_specs=pl.BlockSpec((R, _LANE), lambda i: (i, 0)),
            ),
            compiler_params=pltpu.CompilerParams(
                dimension_semantics=("parallel",)),
        )(stats, mono)

    # Glue: PyTorch's audio.transpose(1, 0) of a [1, T] mono signal is a pure
    # layout change -> reshape and drop the zero padding.
    return out.reshape(T_pad, 1)[:T]


def _reference(waveform: jax.Array) -> jax.Array:
    mono = jnp.mean(waveform.astype(jnp.float32), axis=0, keepdims=True)  # [1, T]
    x = mono.T                                                            # [T, 1]
    mean = jnp.mean(x)
    var = jnp.mean((x - mean) ** 2)
    return (x - mean) * jax.lax.rsqrt(var + _EPS)


if __name__ == "__main__":
    key = jax.random.PRNGKey(0)
    C, T = 2, 2000   # small stereo clip with a ragged (non-128-multiple) length
    waveform = jax.random.normal(key, (C, T), dtype=jnp.float32) * 0.3 + 0.05

    ref = _reference(waveform)

    # Fused (resident-output) path.
    out_fused = jax.block_until_ready(audio_pipeline(waveform))
    assert out_fused.shape == (T, 1), out_fused.shape
    assert jnp.allclose(out_fused, ref, atol=1e-4, rtol=1e-4), float(
        jnp.max(jnp.abs(out_fused - ref)))

    # Force the streaming two-pass fallback (used for very long waveforms).
    out_stream = jax.block_until_ready(
        audio_pipeline(waveform, fused_vmem_budget=0))
    assert out_stream.shape == (T, 1), out_stream.shape
    assert jnp.allclose(out_stream, ref, atol=1e-4, rtol=1e-4), float(
        jnp.max(jnp.abs(out_stream - ref)))

    print("KERNEL_OK")
</pallas_src>

<mosaic_0001>
module attributes {stable_mosaic.version = 11 : i64} {
  func.func @_fused_kernel(%arg0: i32, %arg1: memref<2x16x128xf32, #tpu.memory_space<vmem>>, %arg2: memref<16x128xf32, #tpu.memory_space<vmem>>, %arg3: memref<16x128xf32, #tpu.memory_space<vmem>>, %arg4: memref<16x128xf32, #tpu.memory_space<vmem>>) attributes {dimension_semantics = [#tpu.dimension_semantics<arbitrary>], iteration_bounds = array<i64: 1>, scalar_prefetch = 0 : i64, scratch_operands = 2 : i64, tpu.core_type = #tpu.core_type<tc>, window_params = [{transform_indices = @transform_0, window_bounds = array<i64: 2, 16, 128>}, {pipeline_mode = #tpu.pipeline_mode<synchronous>, transform_indices = @transform_1, window_bounds = array<i64: 16, 128>}]} {
    %c0_i32 = arith.constant 0 : i32
    %0 = arith.cmpi eq, %arg0, %c0_i32 : i32
    %1 = arith.extui %0 : i1 to i32
    %c0_i32_0 = arith.constant 0 : i32
    %2 = arith.cmpi ne, %1, %c0_i32_0 : i32
    scf.if %2 {
      %cst_15 = arith.constant 0.000000e+00 : f32
      %21 = vector.broadcast %cst_15 : f32 to vector<16x128xf32>
      %c0_16 = arith.constant 0 : index
      %c0_17 = arith.constant 0 : index
      %22 = vector.load %arg3[%c0_16, %c0_17] : memref<16x128xf32, #tpu.memory_space<vmem>>, vector<16x128xf32>
      tpu.vector_store %arg3[%c0_16, %c0_17], %21 {strides = array<i32>} : memref<16x128xf32, #tpu.memory_space<vmem>>, vector<16x128xf32>,
      %cst_18 = arith.constant 0.000000e+00 : f32
      %23 = vector.broadcast %cst_18 : f32 to vector<16x128xf32>
      %c0_19 = arith.constant 0 : index
      %c0_20 = arith.constant 0 : index
      %24 = vector.load %arg4[%c0_19, %c0_20] : memref<16x128xf32, #tpu.memory_space<vmem>>, vector<16x128xf32>
      tpu.vector_store %arg4[%c0_19, %c0_20], %23 {strides = array<i32>} : memref<16x128xf32, #tpu.memory_space<vmem>>, vector<16x128xf32>,
    } else {
    }
    %c0 = arith.constant 0 : index
    %c0_1 = arith.constant 0 : index
    %c0_2 = arith.constant 0 : index
    %3 = vector.load %arg1[%c0, %c0_1, %c0_2] : memref<2x16x128xf32, #tpu.memory_space<vmem>>, vector<2x16x128xf32>
    %cst = arith.constant dense<0.000000e+00> : vector<16x128xf32>
    %4 = vector.multi_reduction <add>, %3, %cst [0] : vector<2x16x128xf32> to vector<16x128xf32>
    %cst_3 = arith.constant 5.000000e-01 : f32
    %5 = vector.broadcast %cst_3 : f32 to vector<16x128xf32>
    %6 = arith.mulf %4, %5 : vector<16x128xf32>
    %c16_i32 = arith.constant 16 : i32
    %7 = arith.muli %arg0, %c16_i32 : i32
    %8 = tpu.assume_multiple %7, 16 : i32
    %9 = arith.index_cast %8 : i32 to index
    %c0_4 = arith.constant 0 : index
    %10 = vector.load %arg2[%9, %c0_4] : memref<16x128xf32, #tpu.memory_space<vmem>>, vector<16x128xf32>
    tpu.vector_store %arg2[%9, %c0_4], %6 {strides = array<i32>} : memref<16x128xf32, #tpu.memory_space<vmem>>, vector<16x128xf32>,
    %c0_5 = arith.constant 0 : index
    %c0_6 = arith.constant 0 : index
    %11 = vector.load %arg3[%c0_5, %c0_6] : memref<16x128xf32, #tpu.memory_space<vmem>>, vector<16x128xf32>
    %12 = arith.addf %11, %6 : vector<16x128xf32>
    %c0_7 = arith.constant 0 : index
    %c0_8 = arith.constant 0 : index
    %13 = vector.load %arg3[%c0_7, %c0_8] : memref<16x128xf32, #tpu.memory_space<vmem>>, vector<16x128xf32>
    tpu.vector_store %arg3[%c0_7, %c0_8], %12 {strides = array<i32>} : memref<16x128xf32, #tpu.memory_space<vmem>>, vector<16x128xf32>,
    %c0_9 = arith.constant 0 : index
    %c0_10 = arith.constant 0 : index
    %14 = vector.load %arg4[%c0_9, %c0_10] : memref<16x128xf32, #tpu.memory_space<vmem>>, vector<16x128xf32>
    %15 = arith.mulf %6, %6 : vector<16x128xf32>
    %16 = arith.addf %14, %15 : vector<16x128xf32>
    %c0_11 = arith.constant 0 : index
    %c0_12 = arith.constant 0 : index
    %17 = vector.load %arg4[%c0_11, %c0_12] : memref<16x128xf32, #tpu.memory_space<vmem>>, vector<16x128xf32>
    tpu.vector_store %arg4[%c0_11, %c0_12], %16 {strides = array<i32>} : memref<16x128xf32, #tpu.memory_space<vmem>>, vector<16x128xf32>,
    %c0_i32_13 = arith.constant 0 : i32
    %18 = arith.cmpi eq, %arg0, %c0_i32_13 : i32
    %19 = arith.extui %18 : i1 to i32
    %c0_i32_14 = arith.constant 0 : i32
    %20 = arith.cmpi ne, %19, %c0_i32_14 : i32
    scf.if %20 {
      %c0_15 = arith.constant 0 : index
      %c0_16 = arith.constant 0 : index
      %21 = vector.load %arg3[%c0_15, %c0_16] : memref<16x128xf32, #tpu.memory_space<vmem>>, vector<16x128xf32>
      %22 = vector.shape_cast %21 : vector<16x128xf32> to vector<1x16x128xf32>
      %cst_17 = arith.constant dense<0.000000e+00> : vector<1xf32>
      %23 = vector.multi_reduction <add>, %22, %cst_17 [1, 2] : vector<1x16x128xf32> to vector<1xf32>
      %24 = vector.shape_cast %23 : vector<1xf32> to vector<1x1x1xf32>
      %25 = vector.extract %24[0, 0, 0] : f32 from vector<1x1x1xf32>
      %c0_18 = arith.constant 0 : index
      %c0_19 = arith.constant 0 : index
      %26 = vector.load %arg4[%c0_18, %c0_19] : memref<16x128xf32, #tpu.memory_space<vmem>>, vector<16x128xf32>
      %27 = vector.shape_cast %26 : vector<16x128xf32> to vector<1x16x128xf32>
      %cst_20 = arith.constant dense<0.000000e+00> : vector<1xf32>
      %28 = vector.multi_reduction <add>, %27, %cst_20 [1, 2] : vector<1x16x128xf32> to vector<1xf32>
      %29 = vector.shape_cast %28 : vector<1xf32> to vector<1x1x1xf32>
      %30 = vector.extract %29[0, 0, 0] : f32 from vector<1x1x1xf32>
      %cst_21 = arith.constant 2.000000e+03 : f32
      %31 = arith.divf %25, %cst_21 : f32
      %cst_22 = arith.constant 2.000000e+03 : f32
      %32 = arith.divf %30, %cst_22 : f32
      %33 = arith.mulf %31, %31 : f32
      %34 = arith.subf %32, %33 : f32
      %cst_23 = arith.constant 9.99999974E-6 : f32
      %35 = arith.addf %34, %cst_23 : f32
      %36 = math.rsqrt %35 : f32
      %c0_24 = arith.constant 0 : index
      %c0_25 = arith.constant 0 : index
      %37 = vector.load %arg2[%c0_24, %c0_25] : memref<16x128xf32, #tpu.memory_space<vmem>>, vector<16x128xf32>
      %38 = vector.broadcast %31 : f32 to vector<16x128xf32>
      %39 = arith.subf %37, %38 : vector<16x128xf32>
      %40 = vector.broadcast %36 : f32 to vector<16x128xf32>
      %41 = arith.mulf %39, %40 : vector<16x128xf32>
      %c0_26 = arith.constant 0 : index
      %c0_27 = arith.constant 0 : index
      %42 = vector.load %arg2[%c0_26, %c0_27] : memref<16x128xf32, #tpu.memory_space<vmem>>, vector<16x128xf32>
      tpu.vector_store %arg2[%c0_26, %c0_27], %41 {strides = array<i32>} : memref<16x128xf32, #tpu.memory_space<vmem>>, vector<16x128xf32>,
    } else {
    }
    return
  }
  func.func @transform_0(%arg0: i32) -> (i32, i32, i32) {
    %c0_i32 = arith.constant 0 : i32
    %c0_i32_0 = arith.constant 0 : i32
    %c0_i32_1 = arith.constant 0 : i32
    return %c0_i32, %arg0, %c0_i32_0 : i32, i32, i32
  }
  func.func @transform_1(%arg0: i32) -> (i32, i32) {
    %c0_i32 = arith.constant 0 : i32
    %c0_i32_0 = arith.constant 0 : i32
    %c0_i32_1 = arith.constant 0 : i32
    return %c0_i32, %c0_i32_0 : i32, i32
  }
}

</mosaic_0001>

<llo_original>
// kernel: tpu_custom_call.1
$region0: #{tpu_custom_call.1}
  #allocation0 [shape = 'u32[]', space=smem, size = 0x4, offset = 0x4, fixed_abs, tag = 'smem constant byte address 0x4 - core index']
  #allocation1 [shape = 'u32[144,128]{1,0:T(1,128)}', space=vmem, size = 0x12000, scoped, tag = 'internal scratch']
  #allocation2 [shape = 'f32[16,128]{1,0:T(8,128)}', space=vmem, size = 0x2000, scoped, tag = 'scratch operand']
  #allocation3 [shape = 'f32[16,128]{1,0:T(8,128)}', space=vmem, size = 0x2000, scoped, tag = 'scratch operand']
  %s0 = inlined_call_operand.hbm [shape: f32[2,16,128], index: 0, kind: input, shape index: {}]
  %s1 = inlined_call_operand.hbm [shape: f32[16,128], index: 1, kind: output, shape index: {}]
  %s2 = sld [smem:[#allocation0]]
  $region26: #{tpu_custom_call.1} parent=0
    _
  %s4 = ssub.s32 1, %s2
  %s5 = scalar_select 0, %s4, %s2
  $region1: #{tpu_custom_call.1} parent=0
    #allocation4 [shape = 'u8[16384]{0}', space=vmem, size = 0x4000, scoped, tag = 'input window, operand 0, single buffered']
    #allocation5 [shape = 's32[1]{0}', space=sflag, size = 0x4, scoped, tag = 'scoped memory for tpu_custom_call.1']
    #allocation6 [shape = 's32[1]{0}', space=sflag, size = 0x4, scoped, tag = 'scoped memory for tpu_custom_call.1']
    #allocation7 [shape = 'u8[8192]{0}', space=vmem, size = 0x2000, scoped, tag = 'output window, operand 0, single buffered']
    %6 = vsyncpa [#allocation5], 0
    %7 = vsyncpa [#allocation6], 0
    // Predicated region
    $region2: #{tpu_custom_call.1} parent=1 // pred_check
      _
    $region3: #{tpu_custom_call.1} parent=1 // pred_check_branch
      %9 = sbr.rel (0) target = $region5
    $region4: #{tpu_custom_call.1} parent=1 // pred_region
      %s11 = ssub.s32 512, 512
      %12 = vsyncadd [#allocation5], %s11
      %s13 = sshll.u32 [#allocation4], 4
      %s14 = int_to_ptr.vmem [resolvable:$true] %s13
      %19 = dma.hbm_to_vmem [thread:$0]  %s0, 512, %s14, [#allocation5], 128, 128, 8
    $region5: #{tpu_custom_call.1} parent=1 // pred_fallthru
      _
    // Predicated region
    $region6: #{tpu_custom_call.1} parent=1 // pred_check
      _
    $region7: #{tpu_custom_call.1} parent=1 // pred_check_branch
      %21 = sbr.rel (0) target = $region9
    $region8: #{tpu_custom_call.1} parent=1 // pred_region
      %22 = dma.done [#allocation5], 512
    $region9: #{tpu_custom_call.1} parent=1 // pred_fallthru
      _
    %p23 = scmp.eq.s32.totalorder 0, 0
    // Predicated region
    $region10: #{tpu_custom_call.1} parent=1 // pred_check
      %p24 = pneg %p23
    $region11: #{tpu_custom_call.1} parent=1 // pred_check_branch
      %26 = sbr.rel (%p24) target = $region13
    $region12: #{tpu_custom_call.1} parent=1 // pred_region
      %27 = vst [vmem:[#allocation2] sm:$0xff] 0.0
      %28 = vst [vmem:[#allocation2 + $0x8] sm:$0xff] 0.0
      %29 = vst [vmem:[#allocation3] sm:$0xff] 0.0
      %30 = vst [vmem:[#allocation3 + $0x8] sm:$0xff] 0.0
    $region13: #{tpu_custom_call.1} parent=1 // pred_fallthru
      _
    %v31 = vld [vmem:[#allocation4] sm:$0xff]
    %v32 = vld [vmem:[#allocation4 + $0x8] sm:$0xff]
    %v33 = vld [vmem:[#allocation4 + $0x10] sm:$0xff]
    %v34 = vld [vmem:[#allocation4 + $0x18] sm:$0xff]
    %v35 = vadd.f32 %v31, %v33
    %v36 = vadd.f32 %v32, %v34
    %v37 = vmul.f32 %v35, 0.5
    %v38 = vmul.f32 %v36, 0.5
    %s39 = smul.u32 0, 16
    %s40 = scalar_lea.vmem [#allocation7], %s39
    %41 = vst [vmem:[%s40] sm:$0xff] %v37
    %42 = vst [vmem:[%s40 + $0x8] sm:$0xff] %v38
    %v43 = vld [vmem:[#allocation2] sm:$0xff]
    %v44 = vld [vmem:[#allocation2 + $0x8] sm:$0xff]
    %v45 = vadd.f32 %v43, %v37
    %v46 = vadd.f32 %v44, %v38
    %47 = vst [vmem:[#allocation2] sm:$0xff] %v45
    %48 = vst [vmem:[#allocation2 + $0x8] sm:$0xff] %v46
    %v49 = vld [vmem:[#allocation3] sm:$0xff]
    %v50 = vld [vmem:[#allocation3 + $0x8] sm:$0xff]
    %v51 = vmul.f32 %v37, %v37
    %v52 = vmul.f32 %v38, %v38
    %v53 = vadd.f32 %v49, %v51
    %v54 = vadd.f32 %v50, %v52
    %55 = vst [vmem:[#allocation3] sm:$0xff] %v53
    %56 = vst [vmem:[#allocation3 + $0x8] sm:$0xff] %v54
    // Predicated region
    $region14: #{tpu_custom_call.1} parent=1 // pred_check
      %p57 = pneg %p23
    $region15: #{tpu_custom_call.1} parent=1 // pred_check_branch
      %59 = sbr.rel (%p57) target = $region17
    $region16: #{tpu_custom_call.1} parent=1 // pred_region
      %v60 = vld [vmem:[#allocation2] sm:$0xff]
      %v61 = vld [vmem:[#allocation2 + $0x8] sm:$0xff]
      %v62 = vadd.f32 %v60, %v61
      %63 = vadd.xlane.f32.xlu0 %v62
      %v64 = vpop.xlane.xlu0 %63
      %v65 = vrot.slane %v64, 4
      %v66 = vadd.f32 %v64, %v65
      %v67 = vrot.slane %v66, 2
      %v68 = vadd.f32 %v66, %v67
      %v69 = vrot.slane %v68, 1
      %v70 = vadd.f32 %v68, %v69
      %s71 = vtos %v70
      %v72 = vld [vmem:[#allocation3] sm:$0xff]
      %v73 = vld [vmem:[#allocation3 + $0x8] sm:$0xff]
      %v74 = vadd.f32 %v72, %v73
      %75 = vadd.xlane.f32.xlu0 %v74
      %v76 = vpop.xlane.xlu0 %75
      %v77 = vrot.slane %v76, 4
      %v78 = vadd.f32 %v76, %v77
      %v79 = vrot.slane %v78, 2
      %v80 = vadd.f32 %v78, %v79
      %v81 = vrot.slane %v80, 1
      %v82 = vadd.f32 %v80, %v81
      %s83 = vtos %v82
      %v84 = vrcp.pop 2000.0
      %s85 = vtos %v84
      %s86 = smul.f32 %s71, %s85
      %v87 = vrcp.pop 2000.0
      %s88 = vtos %v87
      %s89 = smul.f32 %s83, %s88
      %s90 = smul.f32 %s86, %s86
      %s91 = ssub.f32 %s89, %s90
      %s92 = sadd.f32 %s91, 1e-05
      %v93 = vstv %s92
      %v94 = vrsqrt.pop %v93
      %s95 = vtos %v94
      %v96 = vld [vmem:[#allocation7] sm:$0xff]
      %v97 = vld [vmem:[#allocation7 + $0x8] sm:$0xff]
      %v98 = vstv %s86
      %v99 = vsub.f32 %v96, %v98
      %v100 = vsub.f32 %v97, %v98
      %v101 = vstv %s95
      %v102 = vmul.f32 %v99, %v101
      %v103 = vmul.f32 %v100, %v101
      %104 = vst [vmem:[#allocation7] sm:$0xff] %v102
      %105 = vst [vmem:[#allocation7 + $0x8] sm:$0xff] %v103
    $region17: #{tpu_custom_call.1} parent=1 // pred_fallthru
      _
    // Predicated region
    $region18: #{tpu_custom_call.1} parent=1 // pred_check
      _
    $region19: #{tpu_custom_call.1} parent=1 // pred_check_branch
      %107 = sbr.rel (0) target = $region21
    $region20: #{tpu_custom_call.1} parent=1 // pred_region
      %s109 = ssub.s32 256, 256
      %110 = vsyncadd [#allocation6], %s109
      %s111 = sshll.u32 [#allocation7], 4
      %s112 = int_to_ptr.vmem [resolvable:$true] %s111
      %117 = dma.vmem_to_hbm [thread:$0]  %s112, 256, %s1, [#allocation6], 128, 128, 8
    $region21: #{tpu_custom_call.1} parent=1 // pred_fallthru
      _
    // Predicated region
    $region22: #{tpu_custom_call.1} parent=1 // pred_check
      _
    $region23: #{tpu_custom_call.1} parent=1 // pred_check_branch
      %119 = sbr.rel (0) target = $region25
    $region24: #{tpu_custom_call.1} parent=1 // pred_region
      %120 = dma.done [#allocation6], 256
    $region25: #{tpu_custom_call.1} parent=1 // pred_fallthru
      _
    %121 = vsyncpa [#allocation5], 1
    %122 = vsyncpa [#allocation6], 1

</llo_original>
